<compile_context>
chip_gen: v7x
topology: tpu7x:2x2x1
jax: 0.10.0
libtpu: 0.0.40
codegen_flags: <defaults>
</compile_context>

<pallas_src>
import math
import functools

import jax
import jax.numpy as jnp
from jax import lax
from jax.experimental import pallas as pl
from jax.experimental.pallas import tpu as pltpu


def _mha_kernel(q_ref, k_ref, wq_ref, wk_ref, wv_ref, o_ref, *,
                n_heads, head_dim, scale):
    # q_ref:  (1, T_q, Dq)       current batch element (f32)
    # k_ref:  (1, T_k, Dk)
    # wq_ref: (Dq, n_units)      head-fused projection weights (bf16)
    # wk_ref: (Dk, n_units)
    # wv_ref: (Dk, n_units)
    # o_ref:  (1, T_q, n_units)  heads concatenated on the last dim
    q = q_ref[0].astype(jnp.bfloat16)     # [T_q, Dq]
    k = k_ref[0].astype(jnp.bfloat16)     # [T_k, Dk]

    # Head-fused projections: bf16 operands, f32 accumulation.
    # Fold the 1/sqrt(key_dim) scale into qh ([T_q, n_units]) instead of the
    # [T_q, T_k] score matrices.
    qh = jnp.dot(q, wq_ref[...], preferred_element_type=jnp.float32) * scale
    kh = jnp.dot(k, wk_ref[...], preferred_element_type=jnp.float32)
    vh = jnp.dot(k, wv_ref[...], preferred_element_type=jnp.float32)

    # Per-head scores / softmax / PV.  n_heads is small and static -> the
    # Python loop is fully unrolled at trace time (no grid overhead).
    outs = []
    for h in range(n_heads):
        lo = h * head_dim
        qh_h = qh[:, lo:lo + head_dim].astype(jnp.bfloat16)   # [T_q, d]
        kh_h = kh[:, lo:lo + head_dim].astype(jnp.bfloat16)   # [T_k, d]
        vh_h = vh[:, lo:lo + head_dim].astype(jnp.bfloat16)   # [T_k, d]

        # Q @ K^T without materializing a transpose: contract last dims.
        s = lax.dot_general(qh_h, kh_h, (((1,), (1,)), ((), ())),
                            preferred_element_type=jnp.float32)  # [T_q, T_k]

        # Numerically-stable softmax along T_k (== F.softmax(dim=3)), f32 stats.
        s = s - jnp.max(s, axis=-1, keepdims=True)
        p = jnp.exp(s)
        p = p * pl.reciprocal(jnp.sum(p, axis=-1, keepdims=True), approx=True)

        o_h = jnp.dot(p.astype(jnp.bfloat16), vh_h,
                      preferred_element_type=jnp.float32)        # [T_q, d]
        outs.append(o_h)

    # Single store of the concatenated-head slab (matches torch.cat over heads).
    o_ref[0] = jnp.concatenate(outs, axis=-1).astype(o_ref.dtype)


def multi_head_attention(query, key, w_qry, w_key, w_val, n_heads, key_dim):
    """
    query: [N, T_q, query_dim] float32
    key:   [N, T_k, key_dim]   float32
    w_*:   PyTorch-convention Linear weights, shape [n_units, in_dim], bias=False
    returns: [N, T_q, n_units]
    """
    N, T_q, Dq = query.shape
    _, T_k, Dk = key.shape
    n_units = w_qry.shape[0]
    assert n_units % n_heads == 0
    d = n_units // n_heads
    scale = 1.0 / math.sqrt(float(key_dim))

    # One-time weight layout: PyTorch [out, in] -> [in, out], bf16 for the MXU.
    # TODO(synk): in a real model, do this once at parameter-load time rather
    #             than per forward call.
    wq_t = w_qry.T.astype(jnp.bfloat16)   # [Dq, n_units]
    wk_t = w_key.T.astype(jnp.bfloat16)   # [Dk, n_units]
    wv_t = w_val.T.astype(jnp.bfloat16)   # [Dk, n_units]

    kernel = functools.partial(_mha_kernel, n_heads=n_heads, head_dim=d,
                               scale=scale)

    out = pl.pallas_call(
        kernel,
        out_shape=jax.ShapeDtypeStruct((N, T_q, n_units), query.dtype),
        grid_spec=pltpu.PrefetchScalarGridSpec(
            num_scalar_prefetch=0,
            grid=(N,),
            in_specs=[
                pl.BlockSpec((1, T_q, Dq), lambda n: (n, 0, 0)),
                pl.BlockSpec((1, T_k, Dk), lambda n: (n, 0, 0)),
                pl.BlockSpec((Dq, n_units), lambda n: (0, 0)),   # weights: resident
                pl.BlockSpec((Dk, n_units), lambda n: (0, 0)),
                pl.BlockSpec((Dk, n_units), lambda n: (0, 0)),
            ],
            out_specs=pl.BlockSpec((1, T_q, n_units), lambda n: (n, 0, 0)),
        ),
        compiler_params=pltpu.CompilerParams(
            dimension_semantics=("parallel",)),
    )(query, key, wq_t, wk_t, wv_t)

    return out
    # TODO(synk): `average=True` branch (uniform attention weights) not
    #             implemented; default forward path (average=False) is
    #             reproduced exactly.


def _reference(query, key, w_qry, w_key, w_val, n_heads, key_dim):
    # Plain-JAX (f32) replica of the PyTorch forward for verification.
    n_units = w_qry.shape[0]
    d = n_units // n_heads
    qrys = query @ w_qry.T
    keys = key @ w_key.T
    vals = key @ w_val.T
    qrys = jnp.stack(jnp.split(qrys, n_units // d, axis=2), axis=0)
    keys = jnp.stack(jnp.split(keys, n_units // d, axis=2), axis=0)
    vals = jnp.stack(jnp.split(vals, n_units // d, axis=2), axis=0)
    scores = jnp.einsum('hnqd,hnkd->hnqk', qrys, keys) / math.sqrt(float(key_dim))
    scores = jax.nn.softmax(scores, axis=3)
    out = jnp.einsum('hnqk,hnkd->hnqd', scores, vals)
    out = jnp.concatenate(jnp.split(out, out.shape[0], axis=0), axis=3)[0]
    return out


if __name__ == "__main__":
    # Small shapes consistent with the module.
    N, T_q, T_k = 2, 8, 8
    query_dim, key_dim = 16, 16
    n_units, n_heads = 32, 4

    root = jax.random.PRNGKey(0)
    kq, kk, kwq, kwk, kwv = jax.random.split(root, 5)

    query = jax.random.normal(kq, (N, T_q, query_dim), dtype=jnp.float32)
    key = jax.random.normal(kk, (N, T_k, key_dim), dtype=jnp.float32)

    # Deterministic PyTorch-Linear-shaped weights [out, in].
    w_qry = jax.random.uniform(kwq, (n_units, query_dim), jnp.float32, -0.25, 0.25)
    w_key = jax.random.uniform(kwk, (n_units, key_dim), jnp.float32, -0.25, 0.25)
    w_val = jax.random.uniform(kwv, (n_units, key_dim), jnp.float32, -0.25, 0.25)

    out = multi_head_attention(query, key, w_qry, w_key, w_val, n_heads, key_dim)
    out = jax.block_until_ready(out)

    ref = _reference(query, key, w_qry, w_key, w_val, n_heads, key_dim)
    assert out.shape == (N, T_q, n_units)
    # bf16 MXU operands + approx EUP reciprocal vs a pure-f32 reference.
    assert jnp.allclose(out, ref, atol=3e-2, rtol=3e-2), "mismatch vs reference"

    print("KERNEL_OK")
</pallas_src>

<mosaic_0001>
module attributes {stable_mosaic.version = 11 : i64} {
  func.func @_mha_kernel(%arg0: i32, %arg1: memref<1x8x16xf32, #tpu.memory_space<vmem>>, %arg2: memref<1x8x16xf32, #tpu.memory_space<vmem>>, %arg3: memref<16x32xbf16, #tpu.memory_space<vmem>>, %arg4: memref<16x32xbf16, #tpu.memory_space<vmem>>, %arg5: memref<16x32xbf16, #tpu.memory_space<vmem>>, %arg6: memref<1x8x32xf32, #tpu.memory_space<vmem>>) attributes {dimension_semantics = [#tpu.dimension_semantics<parallel>], iteration_bounds = array<i64: 2>, scalar_prefetch = 0 : i64, scratch_operands = 0 : i64, tpu.core_type = #tpu.core_type<tc>, window_params = [{transform_indices = @transform_0, window_bounds = array<i64: 1, 8, 16>}, {transform_indices = @transform_1, window_bounds = array<i64: 1, 8, 16>}, {pipeline_mode = #tpu.pipeline_mode<synchronous>, transform_indices = @transform_2, window_bounds = array<i64: 16, 32>}, {pipeline_mode = #tpu.pipeline_mode<synchronous>, transform_indices = @transform_3, window_bounds = array<i64: 16, 32>}, {pipeline_mode = #tpu.pipeline_mode<synchronous>, transform_indices = @transform_4, window_bounds = array<i64: 16, 32>}, {transform_indices = @transform_5, window_bounds = array<i64: 1, 8, 32>}]} {
    %c0 = arith.constant 0 : index
    %c0_0 = arith.constant 0 : index
    %c0_1 = arith.constant 0 : index
    %0 = vector.load %arg1[%c0, %c0_0, %c0_1] : memref<1x8x16xf32, #tpu.memory_space<vmem>>, vector<1x8x16xf32>
    %1 = vector.shape_cast %0 : vector<1x8x16xf32> to vector<8x16xf32>
    %2 = arith.truncf %1 : vector<8x16xf32> to vector<8x16xbf16>
    %c0_2 = arith.constant 0 : index
    %c0_3 = arith.constant 0 : index
    %c0_4 = arith.constant 0 : index
    %3 = vector.load %arg2[%c0_2, %c0_3, %c0_4] : memref<1x8x16xf32, #tpu.memory_space<vmem>>, vector<1x8x16xf32>
    %4 = vector.shape_cast %3 : vector<1x8x16xf32> to vector<8x16xf32>
    %5 = arith.truncf %4 : vector<8x16xf32> to vector<8x16xbf16>
    %c0_5 = arith.constant 0 : index
    %c0_6 = arith.constant 0 : index
    %6 = vector.load %arg3[%c0_5, %c0_6] : memref<16x32xbf16, #tpu.memory_space<vmem>>, vector<16x32xbf16>
    %cst = arith.constant dense<0.000000e+00> : vector<8x32xf32>
    %7 = tpu.matmul %2, %6, %cst {dimension_numbers = #tpu.dot_dimension_numbers<[1], [0], [0], [1], [0, 0, 1, 1], [], []>} : vector<8x16xbf16>, vector<16x32xbf16>, vector<8x32xf32> -> vector<8x32xf32>
    %cst_7 = arith.constant 2.500000e-01 : f32
    %8 = vector.broadcast %cst_7 : f32 to vector<8x32xf32>
    %9 = arith.mulf %7, %8 : vector<8x32xf32>
    %c0_8 = arith.constant 0 : index
    %c0_9 = arith.constant 0 : index
    %10 = vector.load %arg4[%c0_8, %c0_9] : memref<16x32xbf16, #tpu.memory_space<vmem>>, vector<16x32xbf16>
    %cst_10 = arith.constant dense<0.000000e+00> : vector<8x32xf32>
    %11 = tpu.matmul %5, %10, %cst_10 {dimension_numbers = #tpu.dot_dimension_numbers<[1], [0], [0], [1], [0, 0, 1, 1], [], []>} : vector<8x16xbf16>, vector<16x32xbf16>, vector<8x32xf32> -> vector<8x32xf32>
    %c0_11 = arith.constant 0 : index
    %c0_12 = arith.constant 0 : index
    %12 = vector.load %arg5[%c0_11, %c0_12] : memref<16x32xbf16, #tpu.memory_space<vmem>>, vector<16x32xbf16>
    %cst_13 = arith.constant dense<0.000000e+00> : vector<8x32xf32>
    %13 = tpu.matmul %5, %12, %cst_13 {dimension_numbers = #tpu.dot_dimension_numbers<[1], [0], [0], [1], [0, 0, 1, 1], [], []>} : vector<8x16xbf16>, vector<16x32xbf16>, vector<8x32xf32> -> vector<8x32xf32>
    %14 = vector.extract_strided_slice %9 {offsets = [0, 0], sizes = [8, 8], strides = [1, 1]} : vector<8x32xf32> to vector<8x8xf32>
    %15 = arith.truncf %14 : vector<8x8xf32> to vector<8x8xbf16>
    %16 = vector.extract_strided_slice %11 {offsets = [0, 0], sizes = [8, 8], strides = [1, 1]} : vector<8x32xf32> to vector<8x8xf32>
    %17 = arith.truncf %16 : vector<8x8xf32> to vector<8x8xbf16>
    %18 = vector.extract_strided_slice %13 {offsets = [0, 0], sizes = [8, 8], strides = [1, 1]} : vector<8x32xf32> to vector<8x8xf32>
    %19 = arith.truncf %18 : vector<8x8xf32> to vector<8x8xbf16>
    %cst_14 = arith.constant dense<0.000000e+00> : vector<8x8xf32>
    %20 = tpu.matmul %15, %17, %cst_14 {dimension_numbers = #tpu.dot_dimension_numbers<[1], [1], [0], [0], [0, 0, 1, 0], [], []>} : vector<8x8xbf16>, vector<8x8xbf16>, vector<8x8xf32> -> vector<8x8xf32>
    %cst_15 = arith.constant dense<0xFF800000> : vector<8xf32>
    %21 = vector.multi_reduction <maximumf>, %20, %cst_15 [1] : vector<8x8xf32> to vector<8xf32>
    %22 = vector.shape_cast %21 : vector<8xf32> to vector<8x1xf32>
    %23 = vector.broadcast %22 : vector<8x1xf32> to vector<8x8xf32>
    %24 = arith.subf %20, %23 : vector<8x8xf32>
    %25 = math.exp %24 : vector<8x8xf32>
    %cst_16 = arith.constant dense<0.000000e+00> : vector<8xf32>
    %26 = vector.multi_reduction <add>, %25, %cst_16 [1] : vector<8x8xf32> to vector<8xf32>
    %27 = vector.shape_cast %26 : vector<8xf32> to vector<8x1xf32>
    %28 = tpu.reciprocal %27 {approx = true} : vector<8x1xf32> -> vector<8x1xf32>
    %29 = vector.broadcast %28 : vector<8x1xf32> to vector<8x8xf32>
    %30 = arith.mulf %25, %29 : vector<8x8xf32>
    %31 = arith.truncf %30 : vector<8x8xf32> to vector<8x8xbf16>
    %cst_17 = arith.constant dense<0.000000e+00> : vector<8x8xf32>
    %32 = tpu.matmul %31, %19, %cst_17 {dimension_numbers = #tpu.dot_dimension_numbers<[1], [0], [0], [1], [0, 0, 1, 1], [], []>} : vector<8x8xbf16>, vector<8x8xbf16>, vector<8x8xf32> -> vector<8x8xf32>
    %33 = vector.extract_strided_slice %9 {offsets = [0, 8], sizes = [8, 8], strides = [1, 1]} : vector<8x32xf32> to vector<8x8xf32>
    %34 = arith.truncf %33 : vector<8x8xf32> to vector<8x8xbf16>
    %35 = vector.extract_strided_slice %11 {offsets = [0, 8], sizes = [8, 8], strides = [1, 1]} : vector<8x32xf32> to vector<8x8xf32>
    %36 = arith.truncf %35 : vector<8x8xf32> to vector<8x8xbf16>
    %37 = vector.extract_strided_slice %13 {offsets = [0, 8], sizes = [8, 8], strides = [1, 1]} : vector<8x32xf32> to vector<8x8xf32>
    %38 = arith.truncf %37 : vector<8x8xf32> to vector<8x8xbf16>
    %cst_18 = arith.constant dense<0.000000e+00> : vector<8x8xf32>
    %39 = tpu.matmul %34, %36, %cst_18 {dimension_numbers = #tpu.dot_dimension_numbers<[1], [1], [0], [0], [0, 0, 1, 0], [], []>} : vector<8x8xbf16>, vector<8x8xbf16>, vector<8x8xf32> -> vector<8x8xf32>
    %cst_19 = arith.constant dense<0xFF800000> : vector<8xf32>
    %40 = vector.multi_reduction <maximumf>, %39, %cst_19 [1] : vector<8x8xf32> to vector<8xf32>
    %41 = vector.shape_cast %40 : vector<8xf32> to vector<8x1xf32>
    %42 = vector.broadcast %41 : vector<8x1xf32> to vector<8x8xf32>
    %43 = arith.subf %39, %42 : vector<8x8xf32>
    %44 = math.exp %43 : vector<8x8xf32>
    %cst_20 = arith.constant dense<0.000000e+00> : vector<8xf32>
    %45 = vector.multi_reduction <add>, %44, %cst_20 [1] : vector<8x8xf32> to vector<8xf32>
    %46 = vector.shape_cast %45 : vector<8xf32> to vector<8x1xf32>
    %47 = tpu.reciprocal %46 {approx = true} : vector<8x1xf32> -> vector<8x1xf32>
    %48 = vector.broadcast %47 : vector<8x1xf32> to vector<8x8xf32>
    %49 = arith.mulf %44, %48 : vector<8x8xf32>
    %50 = arith.truncf %49 : vector<8x8xf32> to vector<8x8xbf16>
    %cst_21 = arith.constant dense<0.000000e+00> : vector<8x8xf32>
    %51 = tpu.matmul %50, %38, %cst_21 {dimension_numbers = #tpu.dot_dimension_numbers<[1], [0], [0], [1], [0, 0, 1, 1], [], []>} : vector<8x8xbf16>, vector<8x8xbf16>, vector<8x8xf32> -> vector<8x8xf32>
    %52 = vector.extract_strided_slice %9 {offsets = [0, 16], sizes = [8, 8], strides = [1, 1]} : vector<8x32xf32> to vector<8x8xf32>
    %53 = arith.truncf %52 : vector<8x8xf32> to vector<8x8xbf16>
    %54 = vector.extract_strided_slice %11 {offsets = [0, 16], sizes = [8, 8], strides = [1, 1]} : vector<8x32xf32> to vector<8x8xf32>
    %55 = arith.truncf %54 : vector<8x8xf32> to vector<8x8xbf16>
    %56 = vector.extract_strided_slice %13 {offsets = [0, 16], sizes = [8, 8], strides = [1, 1]} : vector<8x32xf32> to vector<8x8xf32>
    %57 = arith.truncf %56 : vector<8x8xf32> to vector<8x8xbf16>
    %cst_22 = arith.constant dense<0.000000e+00> : vector<8x8xf32>
    %58 = tpu.matmul %53, %55, %cst_22 {dimension_numbers = #tpu.dot_dimension_numbers<[1], [1], [0], [0], [0, 0, 1, 0], [], []>} : vector<8x8xbf16>, vector<8x8xbf16>, vector<8x8xf32> -> vector<8x8xf32>
    %cst_23 = arith.constant dense<0xFF800000> : vector<8xf32>
    %59 = vector.multi_reduction <maximumf>, %58, %cst_23 [1] : vector<8x8xf32> to vector<8xf32>
    %60 = vector.shape_cast %59 : vector<8xf32> to vector<8x1xf32>
    %61 = vector.broadcast %60 : vector<8x1xf32> to vector<8x8xf32>
    %62 = arith.subf %58, %61 : vector<8x8xf32>
    %63 = math.exp %62 : vector<8x8xf32>
    %cst_24 = arith.constant dense<0.000000e+00> : vector<8xf32>
    %64 = vector.multi_reduction <add>, %63, %cst_24 [1] : vector<8x8xf32> to vector<8xf32>
    %65 = vector.shape_cast %64 : vector<8xf32> to vector<8x1xf32>
    %66 = tpu.reciprocal %65 {approx = true} : vector<8x1xf32> -> vector<8x1xf32>
    %67 = vector.broadcast %66 : vector<8x1xf32> to vector<8x8xf32>
    %68 = arith.mulf %63, %67 : vector<8x8xf32>
    %69 = arith.truncf %68 : vector<8x8xf32> to vector<8x8xbf16>
    %cst_25 = arith.constant dense<0.000000e+00> : vector<8x8xf32>
    %70 = tpu.matmul %69, %57, %cst_25 {dimension_numbers = #tpu.dot_dimension_numbers<[1], [0], [0], [1], [0, 0, 1, 1], [], []>} : vector<8x8xbf16>, vector<8x8xbf16>, vector<8x8xf32> -> vector<8x8xf32>
    %71 = vector.extract_strided_slice %9 {offsets = [0, 24], sizes = [8, 8], strides = [1, 1]} : vector<8x32xf32> to vector<8x8xf32>
    %72 = arith.truncf %71 : vector<8x8xf32> to vector<8x8xbf16>
    %73 = vector.extract_strided_slice %11 {offsets = [0, 24], sizes = [8, 8], strides = [1, 1]} : vector<8x32xf32> to vector<8x8xf32>
    %74 = arith.truncf %73 : vector<8x8xf32> to vector<8x8xbf16>
    %75 = vector.extract_strided_slice %13 {offsets = [0, 24], sizes = [8, 8], strides = [1, 1]} : vector<8x32xf32> to vector<8x8xf32>
    %76 = arith.truncf %75 : vector<8x8xf32> to vector<8x8xbf16>
    %cst_26 = arith.constant dense<0.000000e+00> : vector<8x8xf32>
    %77 = tpu.matmul %72, %74, %cst_26 {dimension_numbers = #tpu.dot_dimension_numbers<[1], [1], [0], [0], [0, 0, 1, 0], [], []>} : vector<8x8xbf16>, vector<8x8xbf16>, vector<8x8xf32> -> vector<8x8xf32>
    %cst_27 = arith.constant dense<0xFF800000> : vector<8xf32>
    %78 = vector.multi_reduction <maximumf>, %77, %cst_27 [1] : vector<8x8xf32> to vector<8xf32>
    %79 = vector.shape_cast %78 : vector<8xf32> to vector<8x1xf32>
    %80 = vector.broadcast %79 : vector<8x1xf32> to vector<8x8xf32>
    %81 = arith.subf %77, %80 : vector<8x8xf32>
    %82 = math.exp %81 : vector<8x8xf32>
    %cst_28 = arith.constant dense<0.000000e+00> : vector<8xf32>
    %83 = vector.multi_reduction <add>, %82, %cst_28 [1] : vector<8x8xf32> to vector<8xf32>
    %84 = vector.shape_cast %83 : vector<8xf32> to vector<8x1xf32>
    %85 = tpu.reciprocal %84 {approx = true} : vector<8x1xf32> -> vector<8x1xf32>
    %86 = vector.broadcast %85 : vector<8x1xf32> to vector<8x8xf32>
    %87 = arith.mulf %82, %86 : vector<8x8xf32>
    %88 = arith.truncf %87 : vector<8x8xf32> to vector<8x8xbf16>
    %cst_29 = arith.constant dense<0.000000e+00> : vector<8x8xf32>
    %89 = tpu.matmul %88, %76, %cst_29 {dimension_numbers = #tpu.dot_dimension_numbers<[1], [0], [0], [1], [0, 0, 1, 1], [], []>} : vector<8x8xbf16>, vector<8x8xbf16>, vector<8x8xf32> -> vector<8x8xf32>
    %90 = tpu.concatenate %32, %51, %70, %89 in 1 : vector<8x8xf32>, vector<8x8xf32>, vector<8x8xf32>, vector<8x8xf32> -> vector<8x32xf32>
    %c0_30 = arith.constant 0 : index
    %c0_31 = arith.constant 0 : index
    %c0_32 = arith.constant 0 : index
    %91 = vector.load %arg6[%c0_30, %c0_31, %c0_32] : memref<1x8x32xf32, #tpu.memory_space<vmem>>, vector<1x8x32xf32>
    %92 = vector.shape_cast %91 : vector<1x8x32xf32> to vector<8x32xf32>
    %93 = vector.shape_cast %90 : vector<8x32xf32> to vector<1x8x32xf32>
    tpu.vector_store %arg6[%c0_30, %c0_31, %c0_32], %93 {strides = array<i32>} : memref<1x8x32xf32, #tpu.memory_space<vmem>>, vector<1x8x32xf32>,
    return
  }
  func.func @transform_0(%arg0: i32) -> (i32, i32, i32) {
    %c0_i32 = arith.constant 0 : i32
    %c0_i32_0 = arith.constant 0 : i32
    %c0_i32_1 = arith.constant 0 : i32
    return %arg0, %c0_i32, %c0_i32_0 : i32, i32, i32
  }
  func.func @transform_1(%arg0: i32) -> (i32, i32, i32) {
    %c0_i32 = arith.constant 0 : i32
    %c0_i32_0 = arith.constant 0 : i32
    %c0_i32_1 = arith.constant 0 : i32
    return %arg0, %c0_i32, %c0_i32_0 : i32, i32, i32
  }
  func.func @transform_2(%arg0: i32) -> (i32, i32) {
    %c0_i32 = arith.constant 0 : i32
    %c0_i32_0 = arith.constant 0 : i32
    %c0_i32_1 = arith.constant 0 : i32
    return %c0_i32, %c0_i32_0 : i32, i32
  }
  func.func @transform_3(%arg0: i32) -> (i32, i32) {
    %c0_i32 = arith.constant 0 : i32
    %c0_i32_0 = arith.constant 0 : i32
    %c0_i32_1 = arith.constant 0 : i32
    return %c0_i32, %c0_i32_0 : i32, i32
  }
  func.func @transform_4(%arg0: i32) -> (i32, i32) {
    %c0_i32 = arith.constant 0 : i32
    %c0_i32_0 = arith.constant 0 : i32
    %c0_i32_1 = arith.constant 0 : i32
    return %c0_i32, %c0_i32_0 : i32, i32
  }
  func.func @transform_5(%arg0: i32) -> (i32, i32, i32) {
    %c0_i32 = arith.constant 0 : i32
    %c0_i32_0 = arith.constant 0 : i32
    %c0_i32_1 = arith.constant 0 : i32
    return %arg0, %c0_i32, %c0_i32_0 : i32, i32, i32
  }
}

</mosaic_0001>

<llo_original>
// kernel: tpu_custom_call.1
$region0: #{tpu_custom_call.1}
  #allocation0 [shape = 'u32[]', space=smem, size = 0x4, offset = 0x4, fixed_abs, tag = 'smem constant byte address 0x4 - core index']
  #allocation1 [shape = 'u32[144,128]{1,0:T(1,128)}', space=vmem, size = 0x12000, scoped, tag = 'internal scratch']
  %s0 = inlined_call_operand.hbm [shape: f32[2,8,16], index: 0, kind: input, shape index: {}]
  %s1 = inlined_call_operand.hbm [shape: f32[2,8,16], index: 1, kind: input, shape index: {}]
  %s2 = inlined_call_operand.hbm [shape: bf16[16,32], index: 2, kind: input, shape index: {}]
  %s3 = inlined_call_operand.vmem [shape: bf16[16,32], index: 3, kind: input, shape index: {}]
  %s4 = inlined_call_operand.hbm [shape: bf16[16,32], index: 4, kind: input, shape index: {}]
  %s5 = inlined_call_operand.hbm [shape: f32[2,8,32], index: 5, kind: output, shape index: {}]
  %s6 = sld [smem:[#allocation0]]
  $region69: #{tpu_custom_call.1} parent=0
    _
  %s8 = ssub.s32 1, %s6
  %s9 = scalar_select 0, %s8, %s6
  $region1: #{tpu_custom_call.1} parent=0
    #allocation2 [shape = 'u8[8192]{0}', space=vmem, size = 0x2000, scoped, tag = 'input window, operand 0']
    #allocation3 [shape = 's32[2]{0}', space=sflag, size = 0x8, scoped, tag = 'scoped memory for tpu_custom_call.1']
    #allocation4 [shape = 's32[2]{0}', space=sflag, size = 0x8, scoped, tag = 'scoped memory for tpu_custom_call.1']
    #allocation5 [shape = 'u8[8192]{0}', space=vmem, size = 0x2000, scoped, tag = 'input window, operand 1']
    #allocation6 [shape = 's32[2]{0}', space=sflag, size = 0x8, scoped, tag = 'scoped memory for tpu_custom_call.1']
    #allocation7 [shape = 'u8[4096]{0}', space=vmem, size = 0x1000, scoped, tag = 'input window, operand 2, single buffered']
    #allocation8 [shape = 'u8[4096]{0}', space=vmem, size = 0x1000, scoped, tag = 'input window, operand 4, single buffered']
    #allocation9 [shape = 's32[1]{0}', space=sflag, size = 0x4, scoped, tag = 'scoped memory for tpu_custom_call.1']
    #allocation10 [shape = 'u8[8192]{0}', space=vmem, size = 0x2000, scoped, tag = 'output window, operand 0']
    %10 = vsyncpa [#allocation3], 0
    %s11 = scalar_lea.sflag [#allocation3], 1
    %12 = vsyncpa %s11, 0
    %13 = vsyncpa [#allocation6], 0
    %s14 = scalar_lea.sflag [#allocation6], 1
    %15 = vsyncpa %s14, 0
    %16 = vsyncpa [#allocation9], 0
    %17 = vsyncpa [#allocation4], 0
    %s18 = scalar_lea.sflag [#allocation4], 1
    %19 = vsyncpa %s18, 0
    loop: start=0, step=1, limit=4
    $region2: #{tpu_custom_call.1} parent=1 // loop_pre_header
      _
    $region3: #{tpu_custom_call.1} parent=1 // loop_header
      %s21 = sphi 0, %s25
      %p22 = scmp.ge.s32.totalorder %s21, 4
      %s31 = sphi 0, %s33
      %s34 = sphi 0, %s31
      %s35 = sphi 0, %s34
      %s51 = sphi 0, %s35
      %s57 = sphi 0, %s59
      %s60 = sphi 0, %s57
      %s61 = sphi 0, %s60
      %s77 = sphi 0, %s61
      %s81 = sphi 0, %s81
      %s83 = sphi 0, %s81
      %s84 = sphi 0, %s83
      %s98 = sphi 0, %s84
      %s102 = sphi 0, %s102
      %s104 = sphi 0, %s102
      %s105 = sphi 0, %s104
      %s119 = sphi 0, %s105
      %s123 = sphi 0, %s123
      %s125 = sphi 0, %s123
      %s126 = sphi 0, %s125
      %s140 = sphi 0, %s126
      %s146 = sphi 0, %s148
      %s149 = sphi 0, %s146
      %s150 = sphi 0, %s149
      %s166 = sphi 0, %s150
    $region4: #{tpu_custom_call.1} parent=1 // loop_header_branch
      %24 = sbr.rel (%p22) target = $region8
    $region5: #{tpu_custom_call.1} parent=1 // loop_body
      %s26 = ssub.s32 %s21, 1
      %s27 = ssub.s32 %s21, 2
      %s28 = sadd.s32 %s21, 1
      %s29 = ssub.s32 %s21, %s28
      %p30 = scmp.eq.s32.totalorder %s29, 0
      %s32 = sadd.s32 %s31, 1
      %s33 = scalar_select %p30, %s31, %s32
      %p36 = pneg %p30
      %p37 = scmp.eq.s32.totalorder %s21, 1
      %p38 = por %p36, %p37
      %p39 = scmp.ne.s32.totalorder %s31, %s34
      %p40 = scmp.eq.s32.totalorder %s21, 0
      %p41 = por %p39, %p40
      %p42 = scmp.ne.s32.totalorder %s31, %s34
      %p43 = scmp.eq.s32.totalorder %s26, 1
      %p44 = por %p42, %p43
      %p45 = scmp.ne.s32.totalorder %s34, %s35
      %p46 = scmp.eq.s32.totalorder %s26, 0
      %p47 = por %p45, %p46
      %p48 = scmp.ne.s32.totalorder %s34, %s35
      %p49 = scmp.eq.s32.totalorder %s27, 1
      %p50 = por %p48, %p49
      %p52 = scmp.ne.s32.totalorder %s35, %s51
      %p53 = scmp.eq.s32.totalorder %s27, 0
      %p54 = por %p52, %p53
      %s55 = ssub.s32 %s21, %s28
      %p56 = scmp.eq.s32.totalorder %s55, 0
      %s58 = sadd.s32 %s57, 1
      %s59 = scalar_select %p56, %s57, %s58
      %p62 = pneg %p56
      %p63 = scmp.eq.s32.totalorder %s21, 1
      %p64 = por %p62, %p63
      %p65 = scmp.ne.s32.totalorder %s57, %s60
      %p66 = scmp.eq.s32.totalorder %s21, 0
      %p67 = por %p65, %p66
      %p68 = scmp.ne.s32.totalorder %s57, %s60
      %p69 = scmp.eq.s32.totalorder %s26, 1
      %p70 = por %p68, %p69
      %p71 = scmp.ne.s32.totalorder %s60, %s61
      %p72 = scmp.eq.s32.totalorder %s26, 0
      %p73 = por %p71, %p72
      %p74 = scmp.ne.s32.totalorder %s60, %s61
      %p75 = scmp.eq.s32.totalorder %s27, 1
      %p76 = por %p74, %p75
      %p78 = scmp.ne.s32.totalorder %s61, %s77
      %p79 = scmp.eq.s32.totalorder %s27, 0
      %p80 = por %p78, %p79
      %s82 = sadd.s32 %s81, 1
      %p85 = scmp.eq.s32.totalorder %s21, 1
      %p86 = scmp.ne.s32.totalorder %s81, %s83
      %p87 = scmp.eq.s32.totalorder %s21, 0
      %p88 = por %p86, %p87
      %p89 = scmp.ne.s32.totalorder %s81, %s83
      %p90 = scmp.eq.s32.totalorder %s26, 1
      %p91 = por %p89, %p90
      %p92 = scmp.ne.s32.totalorder %s83, %s84
      %p93 = scmp.eq.s32.totalorder %s26, 0
      %p94 = por %p92, %p93
      %p95 = scmp.ne.s32.totalorder %s83, %s84
      %p96 = scmp.eq.s32.totalorder %s27, 1
      %p97 = por %p95, %p96
      %p99 = scmp.ne.s32.totalorder %s84, %s98
      %p100 = scmp.eq.s32.totalorder %s27, 0
      %p101 = por %p99, %p100
      %s103 = sadd.s32 %s102, 1
      %p106 = scmp.eq.s32.totalorder %s21, 1
      %p107 = scmp.ne.s32.totalorder %s102, %s104
      %p108 = scmp.eq.s32.totalorder %s21, 0
      %p109 = por %p107, %p108
      %p110 = scmp.ne.s32.totalorder %s102, %s104
      %p111 = scmp.eq.s32.totalorder %s26, 1
      %p112 = por %p110, %p111
      %p113 = scmp.ne.s32.totalorder %s104, %s105
      %p114 = scmp.eq.s32.totalorder %s26, 0
      %p115 = por %p113, %p114
      %p116 = scmp.ne.s32.totalorder %s104, %s105
      %p117 = scmp.eq.s32.totalorder %s27, 1
      %p118 = por %p116, %p117
      %p120 = scmp.ne.s32.totalorder %s105, %s119
      %p121 = scmp.eq.s32.totalorder %s27, 0
      %p122 = por %p120, %p121
      %s124 = sadd.s32 %s123, 1
      %p127 = scmp.eq.s32.totalorder %s21, 1
      %p128 = scmp.ne.s32.totalorder %s123, %s125
      %p129 = scmp.eq.s32.totalorder %s21, 0
      %p130 = por %p128, %p129
      %p131 = scmp.ne.s32.totalorder %s123, %s125
      %p132 = scmp.eq.s32.totalorder %s26, 1
      %p133 = por %p131, %p132
      %p134 = scmp.ne.s32.totalorder %s125, %s126
      %p135 = scmp.eq.s32.totalorder %s26, 0
      %p136 = por %p134, %p135
      %p137 = scmp.ne.s32.totalorder %s125, %s126
      %p138 = scmp.eq.s32.totalorder %s27, 1
      %p139 = por %p137, %p138
      %p141 = scmp.ne.s32.totalorder %s126, %s140
      %p142 = scmp.eq.s32.totalorder %s27, 0
      %p143 = por %p141, %p142
      %s144 = ssub.s32 %s21, %s28
      %p145 = scmp.eq.s32.totalorder %s144, 0
      %s147 = sadd.s32 %s146, 1
      %s148 = scalar_select %p145, %s146, %s147
      %p151 = pneg %p145
      %p152 = scmp.eq.s32.totalorder %s21, 1
      %p153 = por %p151, %p152
      %p154 = scmp.ne.s32.totalorder %s146, %s149
      %p155 = scmp.eq.s32.totalorder %s21, 0
      %p156 = por %p154, %p155
      %p157 = scmp.ne.s32.totalorder %s146, %s149
      %p158 = scmp.eq.s32.totalorder %s26, 1
      %p159 = por %p157, %p158
      %p160 = scmp.ne.s32.totalorder %s149, %s150
      %p161 = scmp.eq.s32.totalorder %s26, 0
      %p162 = por %p160, %p161
      %p163 = scmp.ne.s32.totalorder %s149, %s150
      %p164 = scmp.eq.s32.totalorder %s27, 1
      %p165 = por %p163, %p164
      %p167 = scmp.ne.s32.totalorder %s150, %s166
      %p168 = scmp.eq.s32.totalorder %s27, 0
      %p169 = por %p167, %p168
      %p170 = scmp.le.s32.totalorder 1, %s21
      %p171 = scmp.lt.s32.totalorder %s21, 3
      %p172 = pnand %p170, %p171
      %p173 = pneg %p172
      // Predicated region
      $region9: #{tpu_custom_call.1} parent=5 // pred_check
        _
      $region10: #{tpu_custom_call.1} parent=5 // pred_check_branch
        %175 = sbr.rel (%p172) target = $region12
      $region11: #{tpu_custom_call.1} parent=5 // pred_region
        %s176 = ssub.s32 %s21, 1
        // Predicated region
        $region13: #{tpu_custom_call.1} parent=11 // pred_check
          %p177 = pneg %p94
        $region14: #{tpu_custom_call.1} parent=11 // pred_check_branch
          %179 = sbr.rel (%p177) target = $region16
        $region15: #{tpu_custom_call.1} parent=11 // pred_region
          %s181 = ssub.s32 128, 128
          %182 = vsyncadd [#allocation6], %s181
          %s183 = sshll.u32 [#allocation7], 4
          %s184 = int_to_ptr.vmem [resolvable:$true] %s183
          %189 = dma.hbm_to_vmem [thread:$0]  %s2, 128, %s184, [#allocation6], 64, 64, 4
        $region16: #{tpu_custom_call.1} parent=11 // pred_fallthru
          _
        // Predicated region
        $region17: #{tpu_custom_call.1} parent=11 // pred_check
          %p190 = pneg %p115
        $region18: #{tpu_custom_call.1} parent=11 // pred_check_branch
          %192 = sbr.rel (%p190) target = $region20
        $region19: #{tpu_custom_call.1} parent=11 // pred_region
          _
        $region20: #{tpu_custom_call.1} parent=11 // pred_fallthru
          _
        // Predicated region
        $region21: #{tpu_custom_call.1} parent=11 // pred_check
          %p193 = pneg %p136
        $region22: #{tpu_custom_call.1} parent=11 // pred_check_branch
          %195 = sbr.rel (%p193) target = $region24
        $region23: #{tpu_custom_call.1} parent=11 // pred_region
          %s197 = ssub.s32 128, 128
          %198 = vsyncadd [#allocation9], %s197
          %s199 = sshll.u32 [#allocation8], 4
          %s200 = int_to_ptr.vmem [resolvable:$true] %s199
          %205 = dma.hbm_to_vmem [thread:$0]  %s4, 128, %s200, [#allocation9], 64, 64, 4
        $region24: #{tpu_custom_call.1} parent=11 // pred_fallthru
          _
      $region12: #{tpu_custom_call.1} parent=5 // pred_fallthru
        _
      %p206 = scmp.lt.s32.totalorder %s21, 2
      // Predicated region
      $region25: #{tpu_custom_call.1} parent=5 // pred_check
        %p207 = pneg %p206
      $region26: #{tpu_custom_call.1} parent=5 // pred_check_branch
        %209 = sbr.rel (%p207) target = $region28
      $region27: #{tpu_custom_call.1} parent=5 // pred_region
        // Predicated region
        $region29: #{tpu_custom_call.1} parent=27 // pred_check
          %p210 = pneg %p41
        $region30: #{tpu_custom_call.1} parent=27 // pred_check_branch
          %212 = sbr.rel (%p210) target = $region32
        $region31: #{tpu_custom_call.1} parent=27 // pred_region
          %s213 = sand.u32 %s31, 1
          %s214 = scalar_lea.sflag [#allocation3], %s213
          %s215 = sand.u32 %s31, 1
          %s216 = smul.addr %s215, 8
          %s217 = scalar_lea.vmem [#allocation2], %s216
          %s219 = ssub.s32 128, 128
          %220 = vsyncadd %s214, %s219
          %s221 = smul.addr %s21, 128
          %s222 = scalar_lea.hbm %s0, %s221
          %s224 = sshll.u32 %s217, 4
          %s225 = int_to_ptr.vmem [resolvable:$true] %s224
          %227 = dma.hbm_to_vmem [thread:$0]  %s222, 128, %s225, %s214
        $region32: #{tpu_custom_call.1} parent=27 // pred_fallthru
          _
        // Predicated region
        $region33: #{tpu_custom_call.1} parent=27 // pred_check
          %p228 = pneg %p67
        $region34: #{tpu_custom_call.1} parent=27 // pred_check_branch
          %230 = sbr.rel (%p228) target = $region36
        $region35: #{tpu_custom_call.1} parent=27 // pred_region
          %s231 = sand.u32 %s21, 1
          %s232 = scalar_lea.sflag [#allocation6], %s231
          %s233 = sand.u32 %s57, 1
          %s234 = smul.addr %s233, 8
          %s235 = scalar_lea.vmem [#allocation5], %s234
          %s237 = ssub.s32 128, 128
          %238 = vsyncadd %s232, %s237
          %s239 = smul.addr %s21, 128
          %s240 = scalar_lea.hbm %s1, %s239
          %s242 = sshll.u32 %s235, 4
          %s243 = int_to_ptr.vmem [resolvable:$true] %s242
          %245 = dma.hbm_to_vmem [thread:$0]  %s240, 128, %s243, %s232
        $region36: #{tpu_custom_call.1} parent=27 // pred_fallthru
          _
      $region28: #{tpu_custom_call.1} parent=5 // pred_fallthru
        _
      %p246 = scmp.le.s32.totalorder 1, %s21
      %p247 = scmp.lt.s32.totalorder %s21, 3
      %p248 = pnand %p246, %p247
      %p249 = pneg %p248
      // Predicated region
      $region37: #{tpu_custom_call.1} parent=5 // pred_check
        _
      $region38: #{tpu_custom_call.1} parent=5 // pred_check_branch
        %251 = sbr.rel (%p248) target = $region40
      $region39: #{tpu_custom_call.1} parent=5 // pred_region
        %s252 = ssub.s32 %s21, 1
        %s253 = sand.u32 %s34, 1
        %s254 = scalar_lea.sflag [#allocation3], %s253
        %s255 = sand.u32 %s34, 1
        %s256 = smul.addr %s255, 8
        %s257 = scalar_lea.vmem [#allocation2], %s256
        // Predicated region
        $region41: #{tpu_custom_call.1} parent=39 // pred_check
          %p258 = pneg %p47
        $region42: #{tpu_custom_call.1} parent=39 // pred_check_branch
          %260 = sbr.rel (%p258) target = $region44
        $region43: #{tpu_custom_call.1} parent=39 // pred_region
          %261 = dma.done %s254, 128
        $region44: #{tpu_custom_call.1} parent=39 // pred_fallthru
          _
        %s262 = sand.u32 %s26, 1
        %s263 = scalar_lea.sflag [#allocation6], %s262
        %s264 = sand.u32 %s60, 1
        %s265 = smul.addr %s264, 8
        %s266 = scalar_lea.vmem [#allocation5], %s265
        // Predicated region
        $region45: #{tpu_custom_call.1} parent=39 // pred_check
          %p267 = pneg %p73
        $region46: #{tpu_custom_call.1} parent=39 // pred_check_branch
          %269 = sbr.rel (%p267) target = $region48
        $region47: #{tpu_custom_call.1} parent=39 // pred_region
          %270 = dma.done %s263, 128
        $region48: #{tpu_custom_call.1} parent=39 // pred_fallthru
          _
        // Predicated region
        $region49: #{tpu_custom_call.1} parent=39 // pred_check
          %p271 = pneg %p94
        $region50: #{tpu_custom_call.1} parent=39 // pred_check_branch
          %273 = sbr.rel (%p271) target = $region52
        $region51: #{tpu_custom_call.1} parent=39 // pred_region
          %274 = dma.done [#allocation6], 128
        $region52: #{tpu_custom_call.1} parent=39 // pred_fallthru
          _
        // Predicated region
        $region53: #{tpu_custom_call.1} parent=39 // pred_check
          %p275 = pneg %p136
        $region54: #{tpu_custom_call.1} parent=39 // pred_check_branch
          %277 = sbr.rel (%p275) target = $region56
        $region55: #{tpu_custom_call.1} parent=39 // pred_region
          %278 = dma.done [#allocation9], 128
        $region56: #{tpu_custom_call.1} parent=39 // pred_fallthru
          _
        %s279 = sand.u32 %s34, 1
        %s280 = scalar_lea.sflag [#allocation3], %s279
        %s281 = sand.u32 %s34, 1
        %s282 = smul.addr %s281, 8
        %s283 = scalar_lea.vmem [#allocation2], %s282
        %p284 = pneg %p47
        %p285 = pneg %p44
        %s286 = sand.u32 %s26, 1
        %s287 = scalar_lea.sflag [#allocation6], %s286
        %s288 = sand.u32 %s60, 1
        %s289 = smul.addr %s288, 8
        %s290 = scalar_lea.vmem [#allocation5], %s289
        %p291 = pneg %p73
        %p292 = pneg %p70
        %p293 = pneg %p94
        %p294 = pneg %p91
        %p295 = pneg %p115
        %p296 = pneg %p112
        %p297 = pneg %p136
        %p298 = pneg %p133
        %p299 = pneg %p162
        %p300 = pneg %p159
        %s301 = sand.u32 %s149, 1
        %s302 = scalar_lea.sflag [#allocation4], %s301
        %s303 = sand.u32 %s149, 1
        %s304 = smul.addr %s303, 8
        %s305 = scalar_lea.vmem [#allocation10], %s304
        %v307 = vld [vmem:[%s257] sm:$0xff]
        %v308 = vpack.c.bf16 %v307, %v307
        %v309 = vld [vmem:[%s266] sm:$0xff]
        %v310 = vpack.c.bf16 %v309, %v309
        %v311 = vld [vmem:[#allocation7] sm:$0xf]
        %v312 = vld [vmem:[#allocation7 + $0x4] sm:$0xf]
        %v315 = vunpack.c.l.b16 %v311
        %v316 = vunpack.c.l.b16 %v312
        %v317 = vpack.c.b16 %v316, %v315
        %vm319 = vcmask 130048
        %v321 = vsel %vm319, %v308, 0
        %323 = vmatprep.subr.bf16.mxu0 0
        %324 = vmatpush1.bf16.msra.mxu0 %v317
        %325 = vmatprep.subr.bf16.mxu0 0
        %326 = vmatpush1.bf16.msra.mxu0 0
        %327 = vmatprep.subr.bf16.mxu0 0
        %328 = vmatpush1.bf16.msra.mxu0 0
        %329 = vmatprep.subr.bf16.mxu0 0
        %330 = vmatpush1.bf16.msra.mxu0 0
        %331 = vmatprep.subr.bf16.mxu0 0
        %332 = vmatpush1.bf16.msra.mxu0 0
        %333 = vmatprep.subr.bf16.mxu0 0
        %334 = vmatpush1.bf16.msra.mxu0 0
        %335 = vmatprep.subr.bf16.mxu0 0
        %336 = vmatpush1.bf16.msra.mxu0 0
        %337 = vmatprep.subr.bf16.mxu0 0
        %338 = vmatpush1.bf16.msra.mxu0 0
        %339 = vmatprep.subr.bf16.mxu0 0
        %340 = vmatpush1.bf16.msra.mxu0 0
        %341 = vmatprep.subr.bf16.mxu0 0
        %342 = vmatpush1.bf16.msra.mxu0 0
        %343 = vmatprep.subr.bf16.mxu0 0
        %344 = vmatpush1.bf16.msra.mxu0 0
        %345 = vmatprep.subr.bf16.mxu0 0
        %346 = vmatpush1.bf16.msra.mxu0 0
        %347 = vmatprep.subr.bf16.mxu0 0
        %348 = vmatpush1.bf16.msra.mxu0 0
        %349 = vmatprep.subr.bf16.mxu0 0
        %350 = vmatpush1.bf16.msra.mxu0 0
        %351 = vmatprep.subr.bf16.mxu0 0
        %352 = vmatpush1.bf16.msra.mxu0 0
        %353 = vmatprep.subr.bf16.mxu0 0
        %354 = vmatpush1.bf16.msra.mxu0 0
        %355 = vmatprep.mubr.bf16.mxu0 0
        %356 = vmatmul.mubr.bf16.gmra.mrb[0].mxu0 %v321
        %v357 = vpop.f32.mrb[0].mxu0
        %v358 = vadd.f32 0.0, %v357
        %v359 = vpop.f32.mrb[0].mxu0
        %v360 = vpop.f32.mrb[0].mxu0
        %v361 = vpop.f32.mrb[0].mxu0
        %362 = vdwg.mxu0
        %v363 = vmul.f32 %v358, 0.25
        %v364 = vld [vmem:[%s3] sm:$0xf]
        %v365 = vld [vmem:[%s3 + $0x4] sm:$0xf]
        %v368 = vunpack.c.l.b16 %v364
        %v369 = vunpack.c.l.b16 %v365
        %v370 = vpack.c.b16 %v369, %v368
        %v373 = vsel %vm319, %v310, 0
        %375 = vmatprep.subr.bf16.mxu0 0
        %376 = vmatpush1.bf16.msra.mxu0 %v370
        %377 = vmatprep.subr.bf16.mxu0 0
        %378 = vmatpush1.bf16.msra.mxu0 0
        %379 = vmatprep.subr.bf16.mxu0 0
        %380 = vmatpush1.bf16.msra.mxu0 0
        %381 = vmatprep.subr.bf16.mxu0 0
        %382 = vmatpush1.bf16.msra.mxu0 0
        %383 = vmatprep.subr.bf16.mxu0 0
        %384 = vmatpush1.bf16.msra.mxu0 0
        %385 = vmatprep.subr.bf16.mxu0 0
        %386 = vmatpush1.bf16.msra.mxu0 0
        %387 = vmatprep.subr.bf16.mxu0 0
        %388 = vmatpush1.bf16.msra.mxu0 0
        %389 = vmatprep.subr.bf16.mxu0 0
        %390 = vmatpush1.bf16.msra.mxu0 0
        %391 = vmatprep.subr.bf16.mxu0 0
        %392 = vmatpush1.bf16.msra.mxu0 0
        %393 = vmatprep.subr.bf16.mxu0 0
        %394 = vmatpush1.bf16.msra.mxu0 0
        %395 = vmatprep.subr.bf16.mxu0 0
        %396 = vmatpush1.bf16.msra.mxu0 0
        %397 = vmatprep.subr.bf16.mxu0 0
        %398 = vmatpush1.bf16.msra.mxu0 0
        %399 = vmatprep.subr.bf16.mxu0 0
        %400 = vmatpush1.bf16.msra.mxu0 0
        %401 = vmatprep.subr.bf16.mxu0 0
        %402 = vmatpush1.bf16.msra.mxu0 0
        %403 = vmatprep.subr.bf16.mxu0 0
        %404 = vmatpush1.bf16.msra.mxu0 0
        %405 = vmatprep.subr.bf16.mxu0 0
        %406 = vmatpush1.bf16.msra.mxu0 0
        %407 = vmatprep.mubr.bf16.mxu0 0
        %408 = vmatmul.mubr.bf16.gmra.mrb[0].mxu0 %v373
        %v409 = vpop.f32.mrb[0].mxu0
        %v410 = vadd.f32 0.0, %v409
        %v411 = vpop.f32.mrb[0].mxu0
        %v412 = vpop.f32.mrb[0].mxu0
        %v413 = vpop.f32.mrb[0].mxu0
        %414 = vdwg.mxu0
        %v415 = vld [vmem:[#allocation8] sm:$0xf]
        %v416 = vld [vmem:[#allocation8 + $0x4] sm:$0xf]
        %v419 = vunpack.c.l.b16 %v415
        %v420 = vunpack.c.l.b16 %v416
        %v421 = vpack.c.b16 %v420, %v419
        %423 = vmatprep.subr.bf16.mxu0 0
        %424 = vmatpush1.bf16.msra.mxu0 %v421
        %425 = vmatprep.subr.bf16.mxu0 0
        %426 = vmatpush1.bf16.msra.mxu0 0
        %427 = vmatprep.subr.bf16.mxu0 0
        %428 = vmatpush1.bf16.msra.mxu0 0
        %429 = vmatprep.subr.bf16.mxu0 0
        %430 = vmatpush1.bf16.msra.mxu0 0
        %431 = vmatprep.subr.bf16.mxu0 0
        %432 = vmatpush1.bf16.msra.mxu0 0
        %433 = vmatprep.subr.bf16.mxu0 0
        %434 = vmatpush1.bf16.msra.mxu0 0
        %435 = vmatprep.subr.bf16.mxu0 0
        %436 = vmatpush1.bf16.msra.mxu0 0
        %437 = vmatprep.subr.bf16.mxu0 0
        %438 = vmatpush1.bf16.msra.mxu0 0
        %439 = vmatprep.subr.bf16.mxu0 0
        %440 = vmatpush1.bf16.msra.mxu0 0
        %441 = vmatprep.subr.bf16.mxu0 0
        %442 = vmatpush1.bf16.msra.mxu0 0
        %443 = vmatprep.subr.bf16.mxu0 0
        %444 = vmatpush1.bf16.msra.mxu0 0
        %445 = vmatprep.subr.bf16.mxu0 0
        %446 = vmatpush1.bf16.msra.mxu0 0
        %447 = vmatprep.subr.bf16.mxu0 0
        %448 = vmatpush1.bf16.msra.mxu0 0
        %449 = vmatprep.subr.bf16.mxu0 0
        %450 = vmatpush1.bf16.msra.mxu0 0
        %451 = vmatprep.subr.bf16.mxu0 0
        %452 = vmatpush1.bf16.msra.mxu0 0
        %453 = vmatprep.subr.bf16.mxu0 0
        %454 = vmatpush1.bf16.msra.mxu0 0
        %455 = vmatprep.mubr.bf16.mxu0 0
        %456 = vmatmul.mubr.bf16.gmra.mrb[0].mxu0 %v373
        %v457 = vpop.f32.mrb[0].mxu0
        %v458 = vadd.f32 0.0, %v457
        %v459 = vpop.f32.mrb[0].mxu0
        %v460 = vpop.f32.mrb[0].mxu0
        %v461 = vpop.f32.mrb[0].mxu0
        %462 = vdwg.mxu0
        %v463 = vpack.c.bf16 %v363, %v363
        %v464 = vpack.c.bf16 %v410, %v410
        %v465 = vpack.c.bf16 %v458, %v458
        %vm466 = vcmask 64512
        %v468 = vsel %vm466, %v463, 0
        %v471 = vsel %vm466, %v464, 0
        %473 = vmatprep.subr.bf16.mxu0 0
        %474 = vmatpush1.bf16.xpose.msra.mxu0 %v471
        %475 = vmatprep.subr.bf16.mxu0 0
        %476 = vmatpush1.bf16.xpose.msra.mxu0 0
        %477 = vmatprep.subr.bf16.mxu0 0
        %478 = vmatpush1.bf16.xpose.msra.mxu0 0
        %479 = vmatprep.subr.bf16.mxu0 0
        %480 = vmatpush1.bf16.xpose.msra.mxu0 0
        %481 = vmatprep.subr.bf16.mxu0 0
        %482 = vmatpush1.bf16.xpose.msra.mxu0 0
        %483 = vmatprep.subr.bf16.mxu0 0
        %484 = vmatpush1.bf16.xpose.msra.mxu0 0
        %485 = vmatprep.subr.bf16.mxu0 0
        %486 = vmatpush1.bf16.xpose.msra.mxu0 0
        %487 = vmatprep.subr.bf16.mxu0 0
        %488 = vmatpush1.bf16.xpose.msra.mxu0 0
        %489 = vmatprep.subr.bf16.mxu0 0
        %490 = vmatpush1.bf16.xpose.msra.mxu0 0
        %491 = vmatprep.subr.bf16.mxu0 0
        %492 = vmatpush1.bf16.xpose.msra.mxu0 0
        %493 = vmatprep.subr.bf16.mxu0 0
        %494 = vmatpush1.bf16.xpose.msra.mxu0 0
        %495 = vmatprep.subr.bf16.mxu0 0
        %496 = vmatpush1.bf16.xpose.msra.mxu0 0
        %497 = vmatprep.subr.bf16.mxu0 0
        %498 = vmatpush1.bf16.xpose.msra.mxu0 0
        %499 = vmatprep.subr.bf16.mxu0 0
        %500 = vmatpush1.bf16.xpose.msra.mxu0 0
        %501 = vmatprep.subr.bf16.mxu0 0
        %502 = vmatpush1.bf16.xpose.msra.mxu0 0
        %503 = vmatprep.subr.bf16.mxu0 0
        %504 = vmatpush1.bf16.xpose.msra.mxu0 0
        %505 = vmatprep.mubr.bf16.mxu0 0
        %506 = vmatmul.mubr.bf16.gmra.mrb[0].mxu0 %v468
        %v507 = vpop.f32.mrb[0].mxu0
        %v508 = vadd.f32 0.0, %v507
        %v509 = vpop.f32.mrb[0].mxu0
        %v510 = vpop.f32.mrb[0].mxu0
        %v511 = vpop.f32.mrb[0].mxu0
        %512 = vdwg.mxu0
        %v513 = vsel %vm466, %v508, -inf
        %514 = vmax.xlane.f32.xlu0 %v513
        %v515 = vpop.xlane.xlu0 %514
        %v516 = vsub.f32 %v508, %v515
        %v517 = vmul.f32 %v516, 1.442695
        %v518 = vpow.pop %v517
        %v519 = vsel %vm466, %v518, 0.0
        %520 = vadd.xlane.f32.xlu0 %v519
        %v521 = vpop.xlane.xlu0 %520
        %v522 = vrcp.pop %v521
        %v523 = vmul.f32 %v518, %v522
        %v524 = vpack.c.bf16 %v523, %v523
        %v526 = vsel %vm466, %v524, 0
        %vm528 = vcmask 1043456
        %v530 = vsel %vm528, %v465, 0
        %532 = vmatprep.subr.bf16.mxu0 0
        %533 = vmatpush1.bf16.msra.mxu0 %v530
        %534 = vmatprep.subr.bf16.mxu0 0
        %535 = vmatpush1.bf16.msra.mxu0 0
        %536 = vmatprep.subr.bf16.mxu0 0
        %537 = vmatpush1.bf16.msra.mxu0 0
        %538 = vmatprep.subr.bf16.mxu0 0
        %539 = vmatpush1.bf16.msra.mxu0 0
        %540 = vmatprep.subr.bf16.mxu0 0
        %541 = vmatpush1.bf16.msra.mxu0 0
        %542 = vmatprep.subr.bf16.mxu0 0
        %543 = vmatpush1.bf16.msra.mxu0 0
        %544 = vmatprep.subr.bf16.mxu0 0
        %545 = vmatpush1.bf16.msra.mxu0 0
        %546 = vmatprep.subr.bf16.mxu0 0
        %547 = vmatpush1.bf16.msra.mxu0 0
        %548 = vmatprep.subr.bf16.mxu0 0
        %549 = vmatpush1.bf16.msra.mxu0 0
        %550 = vmatprep.subr.bf16.mxu0 0
        %551 = vmatpush1.bf16.msra.mxu0 0
        %552 = vmatprep.subr.bf16.mxu0 0
        %553 = vmatpush1.bf16.msra.mxu0 0
        %554 = vmatprep.subr.bf16.mxu0 0
        %555 = vmatpush1.bf16.msra.mxu0 0
        %556 = vmatprep.subr.bf16.mxu0 0
        %557 = vmatpush1.bf16.msra.mxu0 0
        %558 = vmatprep.subr.bf16.mxu0 0
        %559 = vmatpush1.bf16.msra.mxu0 0
        %560 = vmatprep.subr.bf16.mxu0 0
        %561 = vmatpush1.bf16.msra.mxu0 0
        %562 = vmatprep.subr.bf16.mxu0 0
        %563 = vmatpush1.bf16.msra.mxu0 0
        %564 = vmatprep.mubr.bf16.mxu0 0
        %565 = vmatmul.mubr.bf16.gmra.mrb[0].mxu0 %v526
        %v566 = vpop.f32.mrb[0].mxu0
        %v567 = vadd.f32 0.0, %v566
        %v568 = vpop.f32.mrb[0].mxu0
        %v569 = vpop.f32.mrb[0].mxu0
        %v570 = vpop.f32.mrb[0].mxu0
        %571 = vdwg.mxu0
        %573 = vrot.lane.b32.xlu0 %v463, 120
        %v574 = vpop.permute.xlu0 %573
        %576 = vrot.lane.b32.xlu0 %v464, 120
        %v577 = vpop.permute.xlu0 %576
        %v579 = vsel %vm466, %v574, 0
        %v582 = vsel %vm466, %v577, 0
        %584 = vmatprep.subr.bf16.mxu0 0
        %585 = vmatpush1.bf16.xpose.msra.mxu0 %v582
        %586 = vmatprep.subr.bf16.mxu0 0
        %587 = vmatpush1.bf16.xpose.msra.mxu0 0
        %588 = vmatprep.subr.bf16.mxu0 0
        %589 = vmatpush1.bf16.xpose.msra.mxu0 0
        %590 = vmatprep.subr.bf16.mxu0 0
        %591 = vmatpush1.bf16.xpose.msra.mxu0 0
        %592 = vmatprep.subr.bf16.mxu0 0
        %593 = vmatpush1.bf16.xpose.msra.mxu0 0
        %594 = vmatprep.subr.bf16.mxu0 0
        %595 = vmatpush1.bf16.xpose.msra.mxu0 0
        %596 = vmatprep.subr.bf16.mxu0 0
        %597 = vmatpush1.bf16.xpose.msra.mxu0 0
        %598 = vmatprep.subr.bf16.mxu0 0
        %599 = vmatpush1.bf16.xpose.msra.mxu0 0
        %600 = vmatprep.subr.bf16.mxu0 0
        %601 = vmatpush1.bf16.xpose.msra.mxu0 0
        %602 = vmatprep.subr.bf16.mxu0 0
        %603 = vmatpush1.bf16.xpose.msra.mxu0 0
        %604 = vmatprep.subr.bf16.mxu0 0
        %605 = vmatpush1.bf16.xpose.msra.mxu0 0
        %606 = vmatprep.subr.bf16.mxu0 0
        %607 = vmatpush1.bf16.xpose.msra.mxu0 0
        %608 = vmatprep.subr.bf16.mxu0 0
        %609 = vmatpush1.bf16.xpose.msra.mxu0 0
        %610 = vmatprep.subr.bf16.mxu0 0
        %611 = vmatpush1.bf16.xpose.msra.mxu0 0
        %612 = vmatprep.subr.bf16.mxu0 0
        %613 = vmatpush1.bf16.xpose.msra.mxu0 0
        %614 = vmatprep.subr.bf16.mxu0 0
        %615 = vmatpush1.bf16.xpose.msra.mxu0 0
        %616 = vmatprep.mubr.bf16.mxu0 0
        %617 = vmatmul.mubr.bf16.gmra.mrb[0].mxu0 %v579
        %v618 = vpop.f32.mrb[0].mxu0
        %v619 = vadd.f32 0.0, %v618
        %v620 = vpop.f32.mrb[0].mxu0
        %v621 = vpop.f32.mrb[0].mxu0
        %v622 = vpop.f32.mrb[0].mxu0
        %623 = vdwg.mxu0
        %v624 = vsel %vm466, %v619, -inf
        %625 = vmax.xlane.f32.xlu0 %v624
        %v626 = vpop.xlane.xlu0 %625
        %v627 = vsub.f32 %v619, %v626
        %v628 = vmul.f32 %v627, 1.442695
        %v629 = vpow.pop %v628
        %v630 = vsel %vm466, %v629, 0.0
        %631 = vadd.xlane.f32.xlu0 %v630
        %v632 = vpop.xlane.xlu0 %631
        %v633 = vrcp.pop %v632
        %v634 = vmul.f32 %v629, %v633
        %v635 = vpack.c.bf16 %v634, %v634
        %637 = vrot.lane.b32.xlu0 %v465, 120
        %v638 = vpop.permute.xlu0 %637
        %v640 = vsel %vm466, %v635, 0
        %v643 = vsel %vm528, %v638, 0
        %645 = vmatprep.subr.bf16.mxu0 0
        %646 = vmatpush1.bf16.msra.mxu0 %v643
        %647 = vmatprep.subr.bf16.mxu0 0
        %648 = vmatpush1.bf16.msra.mxu0 0
        %649 = vmatprep.subr.bf16.mxu0 0
        %650 = vmatpush1.bf16.msra.mxu0 0
        %651 = vmatprep.subr.bf16.mxu0 0
        %652 = vmatpush1.bf16.msra.mxu0 0
        %653 = vmatprep.subr.bf16.mxu0 0
        %654 = vmatpush1.bf16.msra.mxu0 0
        %655 = vmatprep.subr.bf16.mxu0 0
        %656 = vmatpush1.bf16.msra.mxu0 0
        %657 = vmatprep.subr.bf16.mxu0 0
        %658 = vmatpush1.bf16.msra.mxu0 0
        %659 = vmatprep.subr.bf16.mxu0 0
        %660 = vmatpush1.bf16.msra.mxu0 0
        %661 = vmatprep.subr.bf16.mxu0 0
        %662 = vmatpush1.bf16.msra.mxu0 0
        %663 = vmatprep.subr.bf16.mxu0 0
        %664 = vmatpush1.bf16.msra.mxu0 0
        %665 = vmatprep.subr.bf16.mxu0 0
        %666 = vmatpush1.bf16.msra.mxu0 0
        %667 = vmatprep.subr.bf16.mxu0 0
        %668 = vmatpush1.bf16.msra.mxu0 0
        %669 = vmatprep.subr.bf16.mxu0 0
        %670 = vmatpush1.bf16.msra.mxu0 0
        %671 = vmatprep.subr.bf16.mxu0 0
        %672 = vmatpush1.bf16.msra.mxu0 0
        %673 = vmatprep.subr.bf16.mxu0 0
        %674 = vmatpush1.bf16.msra.mxu0 0
        %675 = vmatprep.subr.bf16.mxu0 0
        %676 = vmatpush1.bf16.msra.mxu0 0
        %677 = vmatprep.mubr.bf16.mxu0 0
        %678 = vmatmul.mubr.bf16.gmra.mrb[0].mxu0 %v640
        %v679 = vpop.f32.mrb[0].mxu0
        %v680 = vadd.f32 0.0, %v679
        %v681 = vpop.f32.mrb[0].mxu0
        %v682 = vpop.f32.mrb[0].mxu0
        %v683 = vpop.f32.mrb[0].mxu0
        %684 = vdwg.mxu0
        %685 = vrot.lane.b32.xlu0 %v463, 112
        %v686 = vpop.permute.xlu0 %685
        %687 = vrot.lane.b32.xlu0 %v464, 112
        %v688 = vpop.permute.xlu0 %687
        %v690 = vsel %vm466, %v686, 0
        %v693 = vsel %vm466, %v688, 0
        %695 = vmatprep.subr.bf16.mxu0 0
        %696 = vmatpush1.bf16.xpose.msra.mxu0 %v693
        %697 = vmatprep.subr.bf16.mxu0 0
        %698 = vmatpush1.bf16.xpose.msra.mxu0 0
        %699 = vmatprep.subr.bf16.mxu0 0
        %700 = vmatpush1.bf16.xpose.msra.mxu0 0
        %701 = vmatprep.subr.bf16.mxu0 0
        %702 = vmatpush1.bf16.xpose.msra.mxu0 0
        %703 = vmatprep.subr.bf16.mxu0 0
        %704 = vmatpush1.bf16.xpose.msra.mxu0 0
        %705 = vmatprep.subr.bf16.mxu0 0
        %706 = vmatpush1.bf16.xpose.msra.mxu0 0
        %707 = vmatprep.subr.bf16.mxu0 0
        %708 = vmatpush1.bf16.xpose.msra.mxu0 0
        %709 = vmatprep.subr.bf16.mxu0 0
        %710 = vmatpush1.bf16.xpose.msra.mxu0 0
        %711 = vmatprep.subr.bf16.mxu0 0
        %712 = vmatpush1.bf16.xpose.msra.mxu0 0
        %713 = vmatprep.subr.bf16.mxu0 0
        %714 = vmatpush1.bf16.xpose.msra.mxu0 0
        %715 = vmatprep.subr.bf16.mxu0 0
        %716 = vmatpush1.bf16.xpose.msra.mxu0 0
        %717 = vmatprep.subr.bf16.mxu0 0
        %718 = vmatpush1.bf16.xpose.msra.mxu0 0
        %719 = vmatprep.subr.bf16.mxu0 0
        %720 = vmatpush1.bf16.xpose.msra.mxu0 0
        %721 = vmatprep.subr.bf16.mxu0 0
        %722 = vmatpush1.bf16.xpose.msra.mxu0 0
        %723 = vmatprep.subr.bf16.mxu0 0
        %724 = vmatpush1.bf16.xpose.msra.mxu0 0
        %725 = vmatprep.subr.bf16.mxu0 0
        %726 = vmatpush1.bf16.xpose.msra.mxu0 0
        %727 = vmatprep.mubr.bf16.mxu0 0
        %728 = vmatmul.mubr.bf16.gmra.mrb[0].mxu0 %v690
        %v729 = vpop.f32.mrb[0].mxu0
        %v730 = vadd.f32 0.0, %v729
        %v731 = vpop.f32.mrb[0].mxu0
        %v732 = vpop.f32.mrb[0].mxu0
        %v733 = vpop.f32.mrb[0].mxu0
        %734 = vdwg.mxu0
        %v735 = vsel %vm466, %v730, -inf
        %736 = vmax.xlane.f32.xlu0 %v735
        %v737 = vpop.xlane.xlu0 %736
        %v738 = vsub.f32 %v730, %v737
        %v739 = vmul.f32 %v738, 1.442695
        %v740 = vpow.pop %v739
        %v741 = vsel %vm466, %v740, 0.0
        %742 = vadd.xlane.f32.xlu0 %v741
        %v743 = vpop.xlane.xlu0 %742
        %v744 = vrcp.pop %v743
        %v745 = vmul.f32 %v740, %v744
        %v746 = vpack.c.bf16 %v745, %v745
        %747 = vrot.lane.b32.xlu0 %v465, 112
        %v748 = vpop.permute.xlu0 %747
        %v750 = vsel %vm466, %v746, 0
        %v753 = vsel %vm528, %v748, 0
        %755 = vmatprep.subr.bf16.mxu0 0
        %756 = vmatpush1.bf16.msra.mxu0 %v753
        %757 = vmatprep.subr.bf16.mxu0 0
        %758 = vmatpush1.bf16.msra.mxu0 0
        %759 = vmatprep.subr.bf16.mxu0 0
        %760 = vmatpush1.bf16.msra.mxu0 0
        %761 = vmatprep.subr.bf16.mxu0 0
        %762 = vmatpush1.bf16.msra.mxu0 0
        %763 = vmatprep.subr.bf16.mxu0 0
        %764 = vmatpush1.bf16.msra.mxu0 0
        %765 = vmatprep.subr.bf16.mxu0 0
        %766 = vmatpush1.bf16.msra.mxu0 0
        %767 = vmatprep.subr.bf16.mxu0 0
        %768 = vmatpush1.bf16.msra.mxu0 0
        %769 = vmatprep.subr.bf16.mxu0 0
        %770 = vmatpush1.bf16.msra.mxu0 0
        %771 = vmatprep.subr.bf16.mxu0 0
        %772 = vmatpush1.bf16.msra.mxu0 0
        %773 = vmatprep.subr.bf16.mxu0 0
        %774 = vmatpush1.bf16.msra.mxu0 0
        %775 = vmatprep.subr.bf16.mxu0 0
        %776 = vmatpush1.bf16.msra.mxu0 0
        %777 = vmatprep.subr.bf16.mxu0 0
        %778 = vmatpush1.bf16.msra.mxu0 0
        %779 = vmatprep.subr.bf16.mxu0 0
        %780 = vmatpush1.bf16.msra.mxu0 0
        %781 = vmatprep.subr.bf16.mxu0 0
        %782 = vmatpush1.bf16.msra.mxu0 0
        %783 = vmatprep.subr.bf16.mxu0 0
        %784 = vmatpush1.bf16.msra.mxu0 0
        %785 = vmatprep.subr.bf16.mxu0 0
        %786 = vmatpush1.bf16.msra.mxu0 0
        %787 = vmatprep.mubr.bf16.mxu0 0
        %788 = vmatmul.mubr.bf16.gmra.mrb[0].mxu0 %v750
        %v789 = vpop.f32.mrb[0].mxu0
        %v790 = vadd.f32 0.0, %v789
        %v791 = vpop.f32.mrb[0].mxu0
        %v792 = vpop.f32.mrb[0].mxu0
        %v793 = vpop.f32.mrb[0].mxu0
        %794 = vdwg.mxu0
        %795 = vrot.lane.b32.xlu0 %v463, 104
        %v796 = vpop.permute.xlu0 %795
        %797 = vrot.lane.b32.xlu0 %v464, 104
        %v798 = vpop.permute.xlu0 %797
        %v800 = vsel %vm466, %v796, 0
        %v803 = vsel %vm466, %v798, 0
        %805 = vmatprep.subr.bf16.mxu0 0
        %806 = vmatpush1.bf16.xpose.msra.mxu0 %v803
        %807 = vmatprep.subr.bf16.mxu0 0
        %808 = vmatpush1.bf16.xpose.msra.mxu0 0
        %809 = vmatprep.subr.bf16.mxu0 0
        %810 = vmatpush1.bf16.xpose.msra.mxu0 0
        %811 = vmatprep.subr.bf16.mxu0 0
        %812 = vmatpush1.bf16.xpose.msra.mxu0 0
        %813 = vmatprep.subr.bf16.mxu0 0
        %814 = vmatpush1.bf16.xpose.msra.mxu0 0
        %815 = vmatprep.subr.bf16.mxu0 0
        %816 = vmatpush1.bf16.xpose.msra.mxu0 0
        %817 = vmatprep.subr.bf16.mxu0 0
        %818 = vmatpush1.bf16.xpose.msra.mxu0 0
        %819 = vmatprep.subr.bf16.mxu0 0
        %820 = vmatpush1.bf16.xpose.msra.mxu0 0
        %821 = vmatprep.subr.bf16.mxu0 0
        %822 = vmatpush1.bf16.xpose.msra.mxu0 0
        %823 = vmatprep.subr.bf16.mxu0 0
        %824 = vmatpush1.bf16.xpose.msra.mxu0 0
        %825 = vmatprep.subr.bf16.mxu0 0
        %826 = vmatpush1.bf16.xpose.msra.mxu0 0
        %827 = vmatprep.subr.bf16.mxu0 0
        %828 = vmatpush1.bf16.xpose.msra.mxu0 0
        %829 = vmatprep.subr.bf16.mxu0 0
        %830 = vmatpush1.bf16.xpose.msra.mxu0 0
        %831 = vmatprep.subr.bf16.mxu0 0
        %832 = vmatpush1.bf16.xpose.msra.mxu0 0
        %833 = vmatprep.subr.bf16.mxu0 0
        %834 = vmatpush1.bf16.xpose.msra.mxu0 0
        %835 = vmatprep.subr.bf16.mxu0 0
        %836 = vmatpush1.bf16.xpose.msra.mxu0 0
        %837 = vmatprep.mubr.bf16.mxu0 0
        %838 = vmatmul.mubr.bf16.gmra.mrb[0].mxu0 %v800
        %v839 = vpop.f32.mrb[0].mxu0
        %v840 = vadd.f32 0.0, %v839
        %v841 = vpop.f32.mrb[0].mxu0
        %v842 = vpop.f32.mrb[0].mxu0
        %v843 = vpop.f32.mrb[0].mxu0
        %844 = vdwg.mxu0
        %v845 = vsel %vm466, %v840, -inf
        %846 = vmax.xlane.f32.xlu0 %v845
        %v847 = vpop.xlane.xlu0 %846
        %v848 = vsub.f32 %v840, %v847
        %v849 = vmul.f32 %v848, 1.442695
        %v850 = vpow.pop %v849
        %v851 = vsel %vm466, %v850, 0.0
        %852 = vadd.xlane.f32.xlu0 %v851
        %v853 = vpop.xlane.xlu0 %852
        %v854 = vrcp.pop %v853
        %v855 = vmul.f32 %v850, %v854
        %v856 = vpack.c.bf16 %v855, %v855
        %857 = vrot.lane.b32.xlu0 %v465, 104
        %v858 = vpop.permute.xlu0 %857
        %v860 = vsel %vm466, %v856, 0
        %v863 = vsel %vm528, %v858, 0
        %865 = vmatprep.subr.bf16.mxu0 0
        %866 = vmatpush1.bf16.msra.mxu0 %v863
        %867 = vmatprep.subr.bf16.mxu0 0
        %868 = vmatpush1.bf16.msra.mxu0 0
        %869 = vmatprep.subr.bf16.mxu0 0
        %870 = vmatpush1.bf16.msra.mxu0 0
        %871 = vmatprep.subr.bf16.mxu0 0
        %872 = vmatpush1.bf16.msra.mxu0 0
        %873 = vmatprep.subr.bf16.mxu0 0
        %874 = vmatpush1.bf16.msra.mxu0 0
        %875 = vmatprep.subr.bf16.mxu0 0
        %876 = vmatpush1.bf16.msra.mxu0 0
        %877 = vmatprep.subr.bf16.mxu0 0
        %878 = vmatpush1.bf16.msra.mxu0 0
        %879 = vmatprep.subr.bf16.mxu0 0
        %880 = vmatpush1.bf16.msra.mxu0 0
        %881 = vmatprep.subr.bf16.mxu0 0
        %882 = vmatpush1.bf16.msra.mxu0 0
        %883 = vmatprep.subr.bf16.mxu0 0
        %884 = vmatpush1.bf16.msra.mxu0 0
        %885 = vmatprep.subr.bf16.mxu0 0
        %886 = vmatpush1.bf16.msra.mxu0 0
        %887 = vmatprep.subr.bf16.mxu0 0
        %888 = vmatpush1.bf16.msra.mxu0 0
        %889 = vmatprep.subr.bf16.mxu0 0
        %890 = vmatpush1.bf16.msra.mxu0 0
        %891 = vmatprep.subr.bf16.mxu0 0
        %892 = vmatpush1.bf16.msra.mxu0 0
        %893 = vmatprep.subr.bf16.mxu0 0
        %894 = vmatpush1.bf16.msra.mxu0 0
        %895 = vmatprep.subr.bf16.mxu0 0
        %896 = vmatpush1.bf16.msra.mxu0 0
        %897 = vmatprep.mubr.bf16.mxu0 0
        %898 = vmatmul.mubr.bf16.gmra.mrb[0].mxu0 %v860
        %v899 = vpop.f32.mrb[0].mxu0
        %v900 = vadd.f32 0.0, %v899
        %v901 = vpop.f32.mrb[0].mxu0
        %v902 = vpop.f32.mrb[0].mxu0
        %v903 = vpop.f32.mrb[0].mxu0
        %904 = vdwg.mxu0
        %906 = vrot.lane.b32.xlu0 %v680, 8
        %v907 = vpop.permute.xlu0 %906
        %910 = vrot.lane.b32.xlu0 %v790, 16
        %v911 = vpop.permute.xlu0 %910
        %914 = vrot.lane.b32.xlu0 %v900, 24
        %v915 = vpop.permute.xlu0 %914
        %v917 = vsel %vm466, %v567, %v907
        %v918 = vsel %vm319, %v917, %v911
        %vm919 = vcmask 195584
        %v920 = vsel %vm919, %v918, %v915
        %vm921 = vcmask 261120
        %922 = vst.msk [vmem:[%s305] sm:$0xff] %vm921, %v920
        %s923 = sand.u32 %s149, 1
        %s924 = scalar_lea.sflag [#allocation4], %s923
        %s925 = sand.u32 %s149, 1
        %s926 = smul.addr %s925, 8
        %s927 = scalar_lea.vmem [#allocation10], %s926
        // Predicated region
        $region57: #{tpu_custom_call.1} parent=39 // pred_check
          %p928 = pneg %p159
        $region58: #{tpu_custom_call.1} parent=39 // pred_check_branch
          %930 = sbr.rel (%p928) target = $region60
        $region59: #{tpu_custom_call.1} parent=39 // pred_region
          %s932 = ssub.s32 128, 128
          %933 = vsyncadd %s924, %s932
          %s934 = smul.addr %s26, 128
          %s935 = scalar_lea.hbm %s5, %s934
          %s937 = sshll.u32 %s927, 4
          %s938 = int_to_ptr.vmem [resolvable:$true] %s937
          %940 = dma.vmem_to_hbm [thread:$0]  %s938, 128, %s935, %s924
        $region60: #{tpu_custom_call.1} parent=39 // pred_fallthru
          _
      $region40: #{tpu_custom_call.1} parent=5 // pred_fallthru
        _
      %p941 = scmp.le.s32.totalorder 2, %s21
      // Predicated region
      $region61: #{tpu_custom_call.1} parent=5 // pred_check
        %p942 = pneg %p941
      $region62: #{tpu_custom_call.1} parent=5 // pred_check_branch
        %944 = sbr.rel (%p942) target = $region64
      $region63: #{tpu_custom_call.1} parent=5 // pred_region
        %s945 = ssub.s32 %s21, 2
        // Predicated region
        $region65: #{tpu_custom_call.1} parent=63 // pred_check
          %p946 = pneg %p165
        $region66: #{tpu_custom_call.1} parent=63 // pred_check_branch
          %948 = sbr.rel (%p946) target = $region68
        $region67: #{tpu_custom_call.1} parent=63 // pred_region
          %s949 = sand.u32 %s150, 1
          %s950 = scalar_lea.sflag [#allocation4], %s949
          %s951 = sand.u32 %s150, 1
          %s952 = smul.addr %s951, 8
          %s953 = scalar_lea.vmem [#allocation10], %s952
          %954 = dma.done %s950, 128
        $region68: #{tpu_custom_call.1} parent=63 // pred_fallthru
          _
      $region64: #{tpu_custom_call.1} parent=5 // pred_fallthru
        _
    $region6: #{tpu_custom_call.1} parent=1 // loop_footer
      %s25 = sadd.s32 1, %s21
    $region7: #{tpu_custom_call.1} parent=1 // loop_footer_branch
      %20 = sbr.rel target = $region3
    $region8: #{tpu_custom_call.1} parent=1 // loop_exit
      _
    %955 = vsyncpa [#allocation3], 1
    %s956 = scalar_lea.sflag [#allocation3], 1
    %957 = vsyncpa %s956, 1
    %958 = vsyncpa [#allocation6], 1
    %s959 = scalar_lea.sflag [#allocation6], 1
    %960 = vsyncpa %s959, 1
    %961 = vsyncpa [#allocation9], 1
    %962 = vsyncpa [#allocation4], 1
    %s963 = scalar_lea.sflag [#allocation4], 1
    %964 = vsyncpa %s963, 1

</llo_original>
